<compile_context>
chip_gen: v7x
topology: tpu7x:2x2x1
jax: 0.10.0
libtpu: 0.0.40
codegen_flags: <defaults>
</compile_context>

<pallas_src>
import functools

import jax
import jax.numpy as jnp
from jax.experimental import pallas as pl
from jax.experimental.pallas import tpu as pltpu


def _focal_loss_kernel(logits_ref, targets_ref, out_ref, *, gamma, n, tm, needs_mask):
    i = pl.program_id(0)

    x = logits_ref[...].astype(jnp.float32)             # (TM, C) logits, f32 in-kernel
    t = targets_ref[...]                                 # (TM, 1) int32 class ids

    # --- per-sample cross entropy from logits (no (TM,C) log-softmax temp) ---
    m = jnp.max(x, axis=-1, keepdims=True)               # (TM, 1)
    z = x - m
    lse = jnp.log(jnp.sum(jnp.exp(z), axis=-1, keepdims=True))              # (TM, 1)
    cls_idx = jax.lax.broadcasted_iota(jnp.int32, x.shape, 1)                # (TM, C)
    z_t = jnp.sum(jnp.where(cls_idx == t, z, 0.0), axis=-1, keepdims=True)   # (TM, 1)
    ce = jnp.maximum(lse - z_t, 0.0)                      # clamp tiny negative rounding

    # --- focal modulation (alpha and 1/N folded into the wrapper epilogue) ---
    pt = jnp.exp(-ce)
    omp = jnp.maximum(1.0 - pt, 0.0)                      # guard pow of negative base
    g = float(gamma)
    if g == 0.0:
        mod = jnp.ones_like(omp)
    elif g.is_integer() and 1.0 <= g <= 4.0:              # default gamma=2 -> one VPU mul
        mod = omp
        for _ in range(int(g) - 1):
            mod = mod * omp
    else:
        mod = jnp.power(omp, g)                           # non-integer gamma only
    focal = mod * ce                                      # (TM, 1)

    # --- mask rows past the true batch (ragged last block reads garbage) ---
    if needs_mask:
        row = jax.lax.broadcasted_iota(jnp.int32, focal.shape, 0) + i * tm
        focal = jnp.where(row < n, focal, 0.0)

    # Per-tile partial sum, written to this tile's own aligned output block.
    s = jnp.sum(focal)
    out_ref[...] = jnp.full(out_ref.shape, s, jnp.float32)


def _pick_block_rows(n_rows, c):
    # ~4 MiB of f32 working set per tile (logits are processed in f32
    # in-kernel regardless of input dtype): large enough to amortize the
    # ~0.35us per-grid-step cost even at v7x's ~3.2 TB/s HBM, small enough
    # that double-buffered inputs + f32 temporaries stay inside a <=48 MiB
    # scoped-VMEM budget (v7x physical VMEM is 64 MiB).
    rows = (4 * 1024 * 1024) // max(c * 4, 1)
    rows = max(8, min(2048, (rows // 8) * 8))
    if n_rows >= 8:
        rows = min(rows, (n_rows // 8) * 8)   # never exceed the batch (no oversize block)
    return rows


def focal_loss(logits, targets, alpha=1.0, gamma=2.0, block_rows=None):
    """logits: (N, C) float (f32 or bf16); targets: (N,) int class indices.

    Returns the scalar mean focal loss (PyTorch FocalLoss with reduce=True).

    Notes:
      * The op is bound by the (N, C) logits read; feeding bf16 logits from
        upstream halves HBM bytes (the f32 cast/logsumexp happen in-kernel).
      * For small class counts (C < 128) every vreg / DMA'd row uses only
        C of 128 lanes, so effective bandwidth is well below peak; plain XLA
        is competitive there. The kernel's advantage materializes at C >= 128.
    """
    n, c = logits.shape
    targets2d = targets.astype(jnp.int32).reshape(n, 1)

    if n < 8:
        # Sub-sublane batch: pad up to 8 rows (trivially cheap); larger ragged
        # batches rely on the in-kernel row mask instead of a full-array pad.
        pad = 8 - n
        logits = jnp.pad(logits, ((0, pad), (0, 0)))
        targets2d = jnp.pad(targets2d, ((0, pad), (0, 0)))
    n_rows = logits.shape[0]

    tm = _pick_block_rows(n_rows, c) if block_rows is None else int(block_rows)
    assert tm > 0 and tm % 8 == 0, "block_rows must be a positive multiple of 8"
    nb = pl.cdiv(n_rows, tm)
    needs_mask = (n_rows % tm != 0) or (n_rows != n)

    # TODO(synk): for vocab-scale C (>=16K) also tile the class axis with a
    # streaming/online logsumexp instead of holding full-C rows in VMEM.

    kernel = functools.partial(
        _focal_loss_kernel, gamma=float(gamma), n=n, tm=tm, needs_mask=needs_mask
    )

    # VMEM budget: double-buffered input tiles + in-kernel f32 working copies
    # (cast, z, exp(z), iota/select) + lane-padded (TM,1) temporaries + output
    # blocks + headroom. Capped at 48 MiB (v7x-safe; v5e/v6e have 128 MiB).
    itemsize = jnp.dtype(logits.dtype).itemsize
    logits_tile = tm * c * itemsize
    f32_work = 6 * tm * c * 4
    col_temps = 12 * tm * 512
    out_blocks = 2 * 8 * 128 * 4
    vmem_limit = int(min(48 * 1024 * 1024,
                         max(8 * 1024 * 1024,
                             2 * (logits_tile + tm * 4) + f32_work + col_temps
                             + out_blocks + (2 << 20))))

    partials = pl.pallas_call(
        kernel,
        out_shape=jax.ShapeDtypeStruct((nb, 8, 128), jnp.float32),
        grid=(nb,),
        in_specs=[
            pl.BlockSpec((tm, c), lambda i: (i, 0)),
            pl.BlockSpec((tm, 1), lambda i: (i, 0)),
        ],
        out_specs=pl.BlockSpec((1, 8, 128), lambda i: (i, 0, 0)),
        compiler_params=pltpu.CompilerParams(
            dimension_semantics=("parallel",),   # independent tiles: both v7x cores
            vmem_limit_bytes=vmem_limit,
        ),
    )(logits, targets2d)

    per_tile = partials[:, 0, 0]                         # (nb,) per-tile focal sums
    return jnp.sum(per_tile) * jnp.float32(float(alpha) / n)


def focal_loss_ref(logits, targets, alpha=1.0, gamma=2.0):
    """Pure-JAX reference (matches F.cross_entropy(reduce=False) + focal + mean)."""
    logp = jax.nn.log_softmax(logits.astype(jnp.float32), axis=-1)
    ce = -jnp.take_along_axis(logp, targets[:, None].astype(jnp.int32), axis=-1)[:, 0]
    pt = jnp.exp(-ce)
    fl = alpha * (1.0 - pt) ** gamma * ce
    return jnp.mean(fl)


if __name__ == "__main__":
    key = jax.random.PRNGKey(0)
    k1, k2 = jax.random.split(key)

    # batch not a multiple of the row tile -> exercises the ragged last block
    # + in-kernel row mask (no wrapper-side padding) and a multi-step grid
    N, C = 60, 32
    logits = jax.random.normal(k1, (N, C), dtype=jnp.float32)
    targets = jax.random.randint(k2, (N,), 0, C, dtype=jnp.int32)

    ref = focal_loss_ref(logits, targets, alpha=1.0, gamma=2.0)

    # explicit small tile -> 4-step parallel grid with per-tile partial sums
    out = focal_loss(logits, targets, alpha=1.0, gamma=2.0, block_rows=16)
    out = jax.block_until_ready(out)
    assert jnp.allclose(out, ref, atol=1e-5, rtol=1e-5), (out, ref)

    # default auto-tiling path
    out2 = focal_loss(logits, targets, alpha=1.0, gamma=2.0)
    out2 = jax.block_until_ready(out2)
    assert jnp.allclose(out2, ref, atol=1e-5, rtol=1e-5), (out2, ref)

    print("KERNEL_OK")
</pallas_src>

<mosaic_0001>
module attributes {stable_mosaic.version = 11 : i64} {
  func.func @_focal_loss_kernel(%arg0: i32, %arg1: memref<16x32xf32, #tpu.memory_space<vmem>>, %arg2: memref<16x1xi32, #tpu.memory_space<vmem>>, %arg3: memref<1x8x128xf32, #tpu.memory_space<vmem>>) attributes {dimension_semantics = [#tpu.dimension_semantics<parallel>], iteration_bounds = array<i64: 4>, scalar_prefetch = 0 : i64, scratch_operands = 0 : i64, tpu.core_type = #tpu.core_type<tc>, window_params = [{transform_indices = @transform_0, window_bounds = array<i64: 16, 32>}, {transform_indices = @transform_1, window_bounds = array<i64: 16, 1>}, {transform_indices = @transform_2, window_bounds = array<i64: 1, 8, 128>}]} {
    %c0 = arith.constant 0 : index
    %c0_0 = arith.constant 0 : index
    %0 = vector.load %arg1[%c0, %c0_0] : memref<16x32xf32, #tpu.memory_space<vmem>>, vector<16x32xf32>
    %c0_1 = arith.constant 0 : index
    %c0_2 = arith.constant 0 : index
    %1 = vector.load %arg2[%c0_1, %c0_2] : memref<16x1xi32, #tpu.memory_space<vmem>>, vector<16x1xi32>
    %cst = arith.constant dense<0xFF800000> : vector<16xf32>
    %2 = vector.multi_reduction <maximumf>, %0, %cst [1] : vector<16x32xf32> to vector<16xf32>
    %3 = vector.shape_cast %2 : vector<16xf32> to vector<16x1xf32>
    %4 = vector.broadcast %3 : vector<16x1xf32> to vector<16x32xf32>
    %5 = arith.subf %0, %4 : vector<16x32xf32>
    %6 = math.exp %5 : vector<16x32xf32>
    %cst_3 = arith.constant dense<0.000000e+00> : vector<16xf32>
    %7 = vector.multi_reduction <add>, %6, %cst_3 [1] : vector<16x32xf32> to vector<16xf32>
    %8 = vector.shape_cast %7 : vector<16xf32> to vector<16x1xf32>
    %9 = math.log %8 : vector<16x1xf32>
    %10 = tpu.iota {dimensions = array<i32: 1>} : vector<16x32xi32>
    %11 = vector.broadcast %1 : vector<16x1xi32> to vector<16x32xi32>
    %12 = arith.cmpi eq, %10, %11 : vector<16x32xi32>
    %cst_4 = arith.constant 0.000000e+00 : f32
    %13 = vector.broadcast %cst_4 : f32 to vector<16x32xf32>
    %14 = arith.select %12, %5, %13 : vector<16x32xi1>, vector<16x32xf32>
    %cst_5 = arith.constant dense<0.000000e+00> : vector<16xf32>
    %15 = vector.multi_reduction <add>, %14, %cst_5 [1] : vector<16x32xf32> to vector<16xf32>
    %16 = vector.shape_cast %15 : vector<16xf32> to vector<16x1xf32>
    %17 = arith.subf %9, %16 : vector<16x1xf32>
    %cst_6 = arith.constant 0.000000e+00 : f32
    %18 = vector.broadcast %cst_6 : f32 to vector<16x1xf32>
    %19 = arith.maximumf %17, %18 : vector<16x1xf32>
    %cst_7 = arith.constant 0.000000e+00 : f32
    %20 = vector.broadcast %cst_7 : f32 to vector<16x1xf32>
    %21 = arith.subf %20, %19 : vector<16x1xf32>
    %22 = math.exp %21 : vector<16x1xf32>
    %cst_8 = arith.constant 1.000000e+00 : f32
    %23 = vector.broadcast %cst_8 : f32 to vector<16x1xf32>
    %24 = arith.subf %23, %22 : vector<16x1xf32>
    %cst_9 = arith.constant 0.000000e+00 : f32
    %25 = vector.broadcast %cst_9 : f32 to vector<16x1xf32>
    %26 = arith.maximumf %24, %25 : vector<16x1xf32>
    %27 = arith.mulf %26, %26 : vector<16x1xf32>
    %28 = arith.mulf %27, %19 : vector<16x1xf32>
    %29 = tpu.iota {dimensions = array<i32: 0>} : vector<16x1xi32>
    %c16_i32 = arith.constant 16 : i32
    %30 = arith.muli %arg0, %c16_i32 : i32
    %31 = vector.broadcast %30 : i32 to vector<16x1xi32>
    %32 = arith.addi %29, %31 : vector<16x1xi32>
    %c60_i32 = arith.constant 60 : i32
    %33 = vector.broadcast %c60_i32 : i32 to vector<16x1xi32>
    %34 = arith.cmpi slt, %32, %33 : vector<16x1xi32>
    %cst_10 = arith.constant 0.000000e+00 : f32
    %35 = vector.broadcast %cst_10 : f32 to vector<16x1xf32>
    %36 = arith.select %34, %28, %35 : vector<16x1xi1>, vector<16x1xf32>
    %37 = vector.shape_cast %36 : vector<16x1xf32> to vector<1x16x1xf32>
    %cst_11 = arith.constant dense<0.000000e+00> : vector<1xf32>
    %38 = vector.multi_reduction <add>, %37, %cst_11 [1, 2] : vector<1x16x1xf32> to vector<1xf32>
    %39 = vector.shape_cast %38 : vector<1xf32> to vector<1x1x1xf32>
    %40 = vector.extract %39[0, 0, 0] : f32 from vector<1x1x1xf32>
    %41 = vector.broadcast %40 : f32 to vector<1x8x128xf32>
    %c0_12 = arith.constant 0 : index
    %c0_13 = arith.constant 0 : index
    %c0_14 = arith.constant 0 : index
    %42 = vector.load %arg3[%c0_12, %c0_13, %c0_14] : memref<1x8x128xf32, #tpu.memory_space<vmem>>, vector<1x8x128xf32>
    tpu.vector_store %arg3[%c0_12, %c0_13, %c0_14], %41 {strides = array<i32>} : memref<1x8x128xf32, #tpu.memory_space<vmem>>, vector<1x8x128xf32>,
    return
  }
  func.func @transform_0(%arg0: i32) -> (i32, i32) {
    %c0_i32 = arith.constant 0 : i32
    %c0_i32_0 = arith.constant 0 : i32
    return %arg0, %c0_i32 : i32, i32
  }
  func.func @transform_1(%arg0: i32) -> (i32, i32) {
    %c0_i32 = arith.constant 0 : i32
    %c0_i32_0 = arith.constant 0 : i32
    return %arg0, %c0_i32 : i32, i32
  }
  func.func @transform_2(%arg0: i32) -> (i32, i32, i32) {
    %c0_i32 = arith.constant 0 : i32
    %c0_i32_0 = arith.constant 0 : i32
    %c0_i32_1 = arith.constant 0 : i32
    return %arg0, %c0_i32, %c0_i32_0 : i32, i32, i32
  }
}

</mosaic_0001>

<llo_original>
// kernel: tpu_custom_call.1
$region0: #{tpu_custom_call.1}
  #allocation0 [shape = 'u32[]', space=smem, size = 0x4, offset = 0x4, fixed_abs, tag = 'smem constant byte address 0x4 - core index']
  #allocation1 [shape = 'u32[144,128]{1,0:T(1,128)}', space=vmem, size = 0x12000, scoped, tag = 'internal scratch']
  %s0 = inlined_call_operand.vmem [shape: f32[60,32], index: 0, kind: input, shape index: {}]
  %s1 = inlined_call_operand.vmem [shape: s32[60,1], index: 1, kind: input, shape index: {}]
  %s2 = inlined_call_operand.hbm [shape: f32[4,8,128], index: 2, kind: output, shape index: {}]
  %s3 = sld [smem:[#allocation0]]
  $region41: #{tpu_custom_call.1} parent=0
    _
  %s5 = ssub.s32 1, %s3
  %s6 = scalar_select 0, %s5, %s3
  $region1: #{tpu_custom_call.1} parent=0
    #allocation2 [shape = 'u8[8192]{0}', space=vmem, size = 0x2000, scoped, tag = 'output window, operand 0']
    #allocation3 [shape = 's32[2]{0}', space=sflag, size = 0x8, scoped, tag = 'scoped memory for tpu_custom_call.1']
    %7 = vsyncpa [#allocation3], 0
    %s8 = scalar_lea.sflag [#allocation3], 1
    %9 = vsyncpa %s8, 0
    loop: start=0, step=1, limit=6
    $region2: #{tpu_custom_call.1} parent=1 // loop_pre_header
      _
    $region3: #{tpu_custom_call.1} parent=1 // loop_header
      %s11 = sphi 0, %s15
      %p12 = scmp.ge.s32.totalorder %s11, 6
      %s21 = sphi 0, %s23
      %s24 = sphi 0, %s21
      %s25 = sphi 0, %s24
      %s41 = sphi 0, %s25
      %s47 = sphi 0, %s49
      %s50 = sphi 0, %s47
      %s51 = sphi 0, %s50
      %s67 = sphi 0, %s51
      %s73 = sphi 0, %s75
      %s76 = sphi 0, %s73
      %s77 = sphi 0, %s76
      %s93 = sphi 0, %s77
    $region4: #{tpu_custom_call.1} parent=1 // loop_header_branch
      %14 = sbr.rel (%p12) target = $region8
    $region5: #{tpu_custom_call.1} parent=1 // loop_body
      %s16 = ssub.s32 %s11, 1
      %s17 = ssub.s32 %s11, 2
      %s18 = sadd.s32 %s11, 1
      %s19 = ssub.s32 %s11, %s18
      %p20 = scmp.eq.s32.totalorder %s19, 0
      %s22 = sadd.s32 %s21, 1
      %s23 = scalar_select %p20, %s21, %s22
      %p26 = pneg %p20
      %p27 = scmp.eq.s32.totalorder %s11, 3
      %p28 = por %p26, %p27
      %p29 = scmp.ne.s32.totalorder %s21, %s24
      %p30 = scmp.eq.s32.totalorder %s11, 0
      %p31 = por %p29, %p30
      %p32 = scmp.ne.s32.totalorder %s21, %s24
      %p33 = scmp.eq.s32.totalorder %s16, 3
      %p34 = por %p32, %p33
      %p35 = scmp.ne.s32.totalorder %s24, %s25
      %p36 = scmp.eq.s32.totalorder %s16, 0
      %p37 = por %p35, %p36
      %p38 = scmp.ne.s32.totalorder %s24, %s25
      %p39 = scmp.eq.s32.totalorder %s17, 3
      %p40 = por %p38, %p39
      %p42 = scmp.ne.s32.totalorder %s25, %s41
      %p43 = scmp.eq.s32.totalorder %s17, 0
      %p44 = por %p42, %p43
      %s45 = ssub.s32 %s11, %s18
      %p46 = scmp.eq.s32.totalorder %s45, 0
      %s48 = sadd.s32 %s47, 1
      %s49 = scalar_select %p46, %s47, %s48
      %p52 = pneg %p46
      %p53 = scmp.eq.s32.totalorder %s11, 3
      %p54 = por %p52, %p53
      %p55 = scmp.ne.s32.totalorder %s47, %s50
      %p56 = scmp.eq.s32.totalorder %s11, 0
      %p57 = por %p55, %p56
      %p58 = scmp.ne.s32.totalorder %s47, %s50
      %p59 = scmp.eq.s32.totalorder %s16, 3
      %p60 = por %p58, %p59
      %p61 = scmp.ne.s32.totalorder %s50, %s51
      %p62 = scmp.eq.s32.totalorder %s16, 0
      %p63 = por %p61, %p62
      %p64 = scmp.ne.s32.totalorder %s50, %s51
      %p65 = scmp.eq.s32.totalorder %s17, 3
      %p66 = por %p64, %p65
      %p68 = scmp.ne.s32.totalorder %s51, %s67
      %p69 = scmp.eq.s32.totalorder %s17, 0
      %p70 = por %p68, %p69
      %s71 = ssub.s32 %s11, %s18
      %p72 = scmp.eq.s32.totalorder %s71, 0
      %s74 = sadd.s32 %s73, 1
      %s75 = scalar_select %p72, %s73, %s74
      %p78 = pneg %p72
      %p79 = scmp.eq.s32.totalorder %s11, 3
      %p80 = por %p78, %p79
      %p81 = scmp.ne.s32.totalorder %s73, %s76
      %p82 = scmp.eq.s32.totalorder %s11, 0
      %p83 = por %p81, %p82
      %p84 = scmp.ne.s32.totalorder %s73, %s76
      %p85 = scmp.eq.s32.totalorder %s16, 3
      %p86 = por %p84, %p85
      %p87 = scmp.ne.s32.totalorder %s76, %s77
      %p88 = scmp.eq.s32.totalorder %s16, 0
      %p89 = por %p87, %p88
      %p90 = scmp.ne.s32.totalorder %s76, %s77
      %p91 = scmp.eq.s32.totalorder %s17, 3
      %p92 = por %p90, %p91
      %p94 = scmp.ne.s32.totalorder %s77, %s93
      %p95 = scmp.eq.s32.totalorder %s17, 0
      %p96 = por %p94, %p95
      %p97 = scmp.le.s32.totalorder 1, %s11
      %p98 = scmp.lt.s32.totalorder %s11, 5
      %p99 = pnand %p97, %p98
      %p100 = pneg %p99
      // Predicated region
      $region9: #{tpu_custom_call.1} parent=5 // pred_check
        _
      $region10: #{tpu_custom_call.1} parent=5 // pred_check_branch
        %102 = sbr.rel (%p99) target = $region12
      $region11: #{tpu_custom_call.1} parent=5 // pred_region
        %s103 = ssub.s32 %s11, 1
      $region12: #{tpu_custom_call.1} parent=5 // pred_fallthru
        _
      %p104 = scmp.lt.s32.totalorder %s11, 4
      // Predicated region
      $region13: #{tpu_custom_call.1} parent=5 // pred_check
        %p105 = pneg %p104
      $region14: #{tpu_custom_call.1} parent=5 // pred_check_branch
        %107 = sbr.rel (%p105) target = $region16
      $region15: #{tpu_custom_call.1} parent=5 // pred_region
        // Predicated region
        $region17: #{tpu_custom_call.1} parent=15 // pred_check
          %p108 = pneg %p31
        $region18: #{tpu_custom_call.1} parent=15 // pred_check_branch
          %110 = sbr.rel (%p108) target = $region20
        $region19: #{tpu_custom_call.1} parent=15 // pred_region
          %s111 = smul.u32 2, %s11
          %p112 = scmp.lt.s32.totalorder %s111, 7
          %s113 = scalar_select %p112, %s111, 7
          %s114 = smul.addr %s113, 8
          %s115 = scalar_lea.vmem %s0, %s114
          %s116 = smul.u32 2, %s11
        $region20: #{tpu_custom_call.1} parent=15 // pred_fallthru
          _
        // Predicated region
        $region21: #{tpu_custom_call.1} parent=15 // pred_check
          %p117 = pneg %p57
        $region22: #{tpu_custom_call.1} parent=15 // pred_check_branch
          %119 = sbr.rel (%p117) target = $region24
        $region23: #{tpu_custom_call.1} parent=15 // pred_region
          %s120 = smul.u32 2, %s11
          %p121 = scmp.lt.s32.totalorder %s120, 7
          %s122 = scalar_select %p121, %s120, 7
          %s123 = smul.addr %s122, 8
          %s124 = scalar_lea.vmem %s1, %s123
          %s125 = smul.u32 2, %s11
        $region24: #{tpu_custom_call.1} parent=15 // pred_fallthru
          _
      $region16: #{tpu_custom_call.1} parent=5 // pred_fallthru
        _
      %p126 = scmp.le.s32.totalorder 1, %s11
      %p127 = scmp.lt.s32.totalorder %s11, 5
      %p128 = pnand %p126, %p127
      %p129 = pneg %p128
      // Predicated region
      $region25: #{tpu_custom_call.1} parent=5 // pred_check
        _
      $region26: #{tpu_custom_call.1} parent=5 // pred_check_branch
        %131 = sbr.rel (%p128) target = $region28
      $region27: #{tpu_custom_call.1} parent=5 // pred_region
        %s132 = ssub.s32 %s11, 1
        %s133 = smul.u32 2, %s16
        %p134 = scmp.lt.s32.totalorder %s133, 7
        %s135 = scalar_select %p134, %s133, 7
        %s136 = smul.addr %s135, 8
        %s137 = scalar_lea.vmem %s0, %s136
        %p138 = pneg %p37
        %p139 = pneg %p34
        %s140 = smul.u32 2, %s16
        %p141 = scmp.lt.s32.totalorder %s140, 7
        %s142 = scalar_select %p141, %s140, 7
        %s143 = smul.addr %s142, 8
        %s144 = scalar_lea.vmem %s1, %s143
        %p145 = pneg %p63
        %p146 = pneg %p60
        %p147 = pneg %p89
        %p148 = pneg %p86
        %s149 = sand.u32 %s76, 1
        %s150 = scalar_lea.sflag [#allocation3], %s149
        %s151 = sand.u32 %s76, 1
        %s152 = smul.addr %s151, 8
        %s153 = scalar_lea.vmem [#allocation2], %s152
        %s154 = smul.u32 2, %s16
        %p155 = scmp.lt.s32.totalorder %s154, 7
        %s156 = scalar_select %p155, %s154, 7
        %s157 = smul.addr %s156, 8
        %s158 = scalar_lea.vmem %s0, %s157
        %s159 = smul.u32 2, %s16
        %s160 = smul.u32 2, %s16
        %p161 = scmp.lt.s32.totalorder %s160, 7
        %s162 = scalar_select %p161, %s160, 7
        %s163 = smul.addr %s162, 8
        %s164 = scalar_lea.vmem %s1, %s163
        %s165 = smul.u32 2, %s16
        %v166 = vld [vmem:[%s158] sm:$0xff]
        %v167 = vld [vmem:[%s158 + $0x8] sm:$0xff]
        %v168 = vld [vmem:[%s164] sm:$0xff]
        %v169 = vld [vmem:[%s164 + $0x8] sm:$0xff]
        %vm170 = vcmask 261120
        %v171 = vsel %vm170, %v166, -inf
        %172 = vmax.xlane.f32.xlu0 %v171
        %v173 = vpop.xlane.xlu0 %172
        %v174 = vsel %vm170, %v167, -inf
        %175 = vmax.xlane.f32.xlu0 %v174
        %v176 = vpop.xlane.xlu0 %175
        %v177 = vsub.f32 %v166, %v173
        %v178 = vsub.f32 %v167, %v176
        %v179 = vmul.f32 %v177, 1.442695
        %v180 = vpow.pop %v179
        %v181 = vmul.f32 %v178, 1.442695
        %v182 = vpow.pop %v181
        %v183 = vsel %vm170, %v180, 0.0
        %184 = vadd.xlane.f32.xlu0 %v183
        %v185 = vpop.xlane.xlu0 %184
        %v186 = vsel %vm170, %v182, 0.0
        %187 = vadd.xlane.f32.xlu0 %v186
        %v188 = vpop.xlane.xlu0 %187
        %v189 = vlog2.pop %v185
        %v190 = vmul.f32 %v189, 0.6931472
        %v191 = vlog2.pop %v188
        %v192 = vmul.f32 %v191, 0.6931472
        %v193 = vlaneseq
        %v194 = vand.u32 %v193, 127
        %195 = vset.pattern.permute.xlu0 0
        %196 = vperm.xlu0 %195, %v168
        %v197 = vpop.permute.xlu0 %196
        %198 = vset.pattern.permute.xlu0 0
        %199 = vperm.xlu0 %198, %v169
        %v200 = vpop.permute.xlu0 %199
        %vm201 = vcmp.eq.s32.totalorder %v194, %v197
        %vm202 = vcmp.eq.s32.totalorder %v194, %v200
        %v203 = vsel %vm201, %v177, 0.0
        %v204 = vsel %vm202, %v178, 0.0
        %v205 = vsel %vm170, %v203, 0.0
        %206 = vadd.xlane.f32.xlu0 %v205
        %v207 = vpop.xlane.xlu0 %206
        %v208 = vsel %vm170, %v204, 0.0
        %209 = vadd.xlane.f32.xlu0 %v208
        %v210 = vpop.xlane.xlu0 %209
        %v211 = vsub.f32 %v190, %v207
        %v212 = vsub.f32 %v192, %v210
        %v213 = vmax.f32 %v211, 0.0
        %v214 = vmax.f32 %v212, 0.0
        %v215 = vsub.f32 0.0, %v213
        %v216 = vsub.f32 0.0, %v214
        %v217 = vmul.f32 %v215, 1.442695
        %v218 = vpow.pop %v217
        %v219 = vmul.f32 %v216, 1.442695
        %v220 = vpow.pop %v219
        %v221 = vsub.f32 1.0, %v218
        %v222 = vsub.f32 1.0, %v220
        %v223 = vmax.f32 %v221, 0.0
        %v224 = vmax.f32 %v222, 0.0
        %v225 = vmul.f32 %v223, %v223
        %v226 = vmul.f32 %v224, %v224
        %v227 = vmul.f32 %v225, %v213
        %v228 = vmul.f32 %v226, %v214
        %v229 = vlaneseq
        %v230 = vshrl.u32 %v229, 7
        %v231 = vadd.s32 %v230, 8
        %s232 = smul.u32 %s16, 16
        %v233 = vstv %s232
        %v234 = vadd.s32 %v230, %v233
        %v235 = vadd.s32 %v231, %v233
        %vm236 = vcmp.lt.s32.totalorder %v234, 60
        %vm237 = vcmp.lt.s32.totalorder %v235, 60
        %v238 = vsel %vm236, %v227, 0.0
        %v239 = vsel %vm237, %v228, 0.0
        %vm240 = vcmask 7168
        %v241 = vsel %vm240, %v238, 0.0
        %v242 = vsel %vm240, %v239, 0.0
        %v243 = vadd.f32 %v241, %v242
        %244 = vadd.xlane.f32.xlu0 %v243
        %v245 = vpop.xlane.xlu0 %244
        %v246 = vrot.slane %v245, 4
        %v247 = vadd.f32 %v245, %v246
        %v248 = vrot.slane %v247, 2
        %v249 = vadd.f32 %v247, %v248
        %v250 = vrot.slane %v249, 1
        %v251 = vadd.f32 %v249, %v250
        %s252 = vtos %v251
        %v253 = vstv %s252
        %254 = vst [vmem:[%s153] sm:$0xff] %v253
        %s255 = sand.u32 %s76, 1
        %s256 = scalar_lea.sflag [#allocation3], %s255
        %s257 = sand.u32 %s76, 1
        %s258 = smul.addr %s257, 8
        %s259 = scalar_lea.vmem [#allocation2], %s258
        // Predicated region
        $region29: #{tpu_custom_call.1} parent=27 // pred_check
          %p260 = pneg %p86
        $region30: #{tpu_custom_call.1} parent=27 // pred_check_branch
          %262 = sbr.rel (%p260) target = $region32
        $region31: #{tpu_custom_call.1} parent=27 // pred_region
          %s264 = ssub.s32 128, 128
          %265 = vsyncadd %s256, %s264
          %s266 = smul.addr %s16, 128
          %s267 = scalar_lea.hbm %s2, %s266
          %s269 = sshll.u32 %s259, 4
          %s270 = int_to_ptr.vmem [resolvable:$true] %s269
          %272 = dma.vmem_to_hbm [thread:$0]  %s270, 128, %s267, %s256
        $region32: #{tpu_custom_call.1} parent=27 // pred_fallthru
          _
      $region28: #{tpu_custom_call.1} parent=5 // pred_fallthru
        _
      %p273 = scmp.le.s32.totalorder 2, %s11
      // Predicated region
      $region33: #{tpu_custom_call.1} parent=5 // pred_check
        %p274 = pneg %p273
      $region34: #{tpu_custom_call.1} parent=5 // pred_check_branch
        %276 = sbr.rel (%p274) target = $region36
      $region35: #{tpu_custom_call.1} parent=5 // pred_region
        %s277 = ssub.s32 %s11, 2
        // Predicated region
        $region37: #{tpu_custom_call.1} parent=35 // pred_check
          %p278 = pneg %p92
        $region38: #{tpu_custom_call.1} parent=35 // pred_check_branch
          %280 = sbr.rel (%p278) target = $region40
        $region39: #{tpu_custom_call.1} parent=35 // pred_region
          %s281 = sand.u32 %s77, 1
          %s282 = scalar_lea.sflag [#allocation3], %s281
          %s283 = sand.u32 %s77, 1
          %s284 = smul.addr %s283, 8
          %s285 = scalar_lea.vmem [#allocation2], %s284
          %286 = dma.done %s282, 128
        $region40: #{tpu_custom_call.1} parent=35 // pred_fallthru
          _
      $region36: #{tpu_custom_call.1} parent=5 // pred_fallthru
        _
    $region6: #{tpu_custom_call.1} parent=1 // loop_footer
      %s15 = sadd.s32 1, %s11
    $region7: #{tpu_custom_call.1} parent=1 // loop_footer_branch
      %10 = sbr.rel target = $region3
    $region8: #{tpu_custom_call.1} parent=1 // loop_exit
      _
    %287 = vsyncpa [#allocation3], 1
    %s288 = scalar_lea.sflag [#allocation3], 1
    %289 = vsyncpa %s288, 1

</llo_original>
